<compile_context>
chip_gen: v7x
topology: tpu7x:2x2x1
jax: 0.10.0
libtpu: 0.0.40
codegen_flags: <defaults>
</compile_context>

<pallas_src>
import functools

import jax
import jax.numpy as jnp
from jax.experimental import pallas as pl
from jax.experimental.pallas import tpu as pltpu


# --------------------------------------------------------------------------
# padding / tiling helpers
# --------------------------------------------------------------------------
_VOCAB_BLOCK = 2048        # vocab tile (contraction dim), multiple of 256


def _round_up(x: int, m: int) -> int:
    return ((x + m - 1) // m) * m


def _pad_sizes(n_V: int, n_d: int):
    """Lane/MXU-aligned padded table sizes and the vocab tile KV."""
    n_d_pad = _round_up(max(n_d, 128), 128)            # output lanes
    n_V_256 = _round_up(max(n_V, 256), 256)            # contraction, 256-aligned
    if n_V_256 <= _VOCAB_BLOCK:
        kv = n_V_256
        n_V_pad = n_V_256
    else:
        kv = _VOCAB_BLOCK
        n_V_pad = _round_up(n_V, kv)
    return n_V_pad, n_d_pad, kv


# --------------------------------------------------------------------------
# kernel: K-tiled one-hot matmul gather with f32 accumulator
# --------------------------------------------------------------------------
def _embed_onehot_kernel(ids_ref, w_ref, out_ref, acc_ref):
    """Gather TB embedding rows for one vocab tile and accumulate.

    ids_ref : (TB, 1) int32       token ids for this token block (global ids)
    w_ref   : (KV, n_d_pad)       one vocab tile of the embedding table
    out_ref : (TB, n_d_pad)       gathered rows (written at the last K step)
    acc_ref : (TB, n_d_pad) f32   accumulator scratch
    """
    k = pl.program_id(1)
    nk = pl.num_programs(1)
    tb = ids_ref.shape[0]
    kv = w_ref.shape[0]

    @pl.when(k == 0)
    def _():
        acc_ref[...] = jnp.zeros_like(acc_ref)

    # Ids relative to this vocab tile; compare in int32 (v5e-safe) and cast to
    # the table dtype only right before the MXU dot.
    local_ids = ids_ref[...] - k * kv                     # (TB, 1) int32
    one_hot = (local_ids ==
               jax.lax.broadcasted_iota(jnp.int32, (tb, kv), 1))
    acc_ref[...] += jnp.dot(one_hot.astype(w_ref.dtype), w_ref[...],
                            preferred_element_type=jnp.float32)

    @pl.when(k == nk - 1)
    def _():
        out_ref[...] = acc_ref[...].astype(out_ref.dtype)


def embed_lookup(w_pad: jax.Array, flat_ids: jax.Array, *,
                 n_d: int, kv: int, token_block: int = 256) -> jax.Array:
    """Row gather `weight[flat_ids]` with a K-tiled one-hot-matmul kernel.

    `w_pad` must already be padded to (n_V_pad, n_d_pad) with n_V_pad a
    multiple of `kv` and n_d_pad a multiple of 128 (see `_pad_sizes`).
    """
    n_V_pad, n_d_pad = w_pad.shape
    assert n_V_pad % kv == 0 and n_d_pad % 128 == 0
    T = int(flat_ids.shape[0])

    # Token block: sublane aligned; large blocks amortize the ~0.35us/step
    # overhead, small inputs are not padded past what they need.
    TB = _round_up(min(token_block, _round_up(T, 8)), 8)
    T_pad = _round_up(T, TB)

    ids = flat_ids.astype(jnp.int32)
    if T_pad != T:
        ids = jnp.pad(ids, (0, T_pad - T))        # padded tokens reuse id 0
    ids_pad = ids.reshape(T_pad, 1)

    # Explicit scoped-VMEM budget: double-buffered weight/out/id tiles, the
    # f32 accumulator and the (TB, KV) one-hot intermediate, plus headroom.
    itemsize = jnp.dtype(w_pad.dtype).itemsize
    vmem_bytes = (2 * kv * n_d_pad * itemsize     # weight tiles (x2 buffers)
                  + 2 * TB * n_d_pad * itemsize   # output tiles (x2 buffers)
                  + 2 * TB * 4                    # id tiles
                  + TB * n_d_pad * 4              # accumulator scratch
                  + 2 * TB * kv * 4)              # one-hot + temporaries
    vmem_limit = int(min(max(2 * vmem_bytes, 32 << 20), 64 << 20))

    out = pl.pallas_call(
        _embed_onehot_kernel,
        out_shape=jax.ShapeDtypeStruct((T_pad, n_d_pad), w_pad.dtype),
        grid_spec=pltpu.PrefetchScalarGridSpec(
            num_scalar_prefetch=0,
            grid=(T_pad // TB, n_V_pad // kv),     # reduction axis last
            in_specs=[
                # token ids for this block (lane dim 1 == full array dim)
                pl.BlockSpec((TB, 1), lambda i, k: (i, 0)),
                # streamed vocab tile of the table
                pl.BlockSpec((kv, n_d_pad), lambda i, k: (k, 0)),
            ],
            out_specs=pl.BlockSpec((TB, n_d_pad), lambda i, k: (i, 0)),
            scratch_shapes=[pltpu.VMEM((TB, n_d_pad), jnp.float32)],
        ),
        compiler_params=pltpu.CompilerParams(
            dimension_semantics=("parallel", "arbitrary"),
            vmem_limit_bytes=vmem_limit,
        ),
    )(ids_pad, w_pad)
    return out[:T, :n_d]


# --------------------------------------------------------------------------
# module wrapper (forward-only port of the PyTorch `embed`)
# --------------------------------------------------------------------------
class Embed:
    """JAX/Pallas port of the PyTorch `embed` module (forward pass only)."""

    def __init__(self, n_d, word2id, fix_emb=True, oov='<oov>', pad='<pad>',
                 normalize=True, key=None, table_dtype=jnp.float32):
        self.word2id = word2id
        self.id2word = {i: w for w, i in word2id.items()}
        self.n_V, self.n_d = len(word2id), n_d
        self.oovid = word2id[oov]
        self.padid = word2id[pad]
        if key is None:
            key = jax.random.PRNGKey(0)
        # Matches the torch module's forward semantics: uniform(-0.25, 0.25)
        # over the whole table (the original also overwrites padding_idx),
        # then per-row L2 normalize.  Distribution matches, not exact bits.
        w = jax.random.uniform(key, (self.n_V, n_d), dtype=jnp.float32,
                               minval=-0.25, maxval=0.25)
        if normalize:
            norms = jnp.sqrt(jnp.sum(w * w, axis=1, keepdims=True))
            w = w / jnp.maximum(norms, 1e-12)     # eps guard, numerically inert
        self.weight = w.astype(table_dtype)

        # Pad the table ONCE (review: no per-forward rebuild) and jit lookup.
        n_V_pad, n_d_pad, kv = _pad_sizes(self.n_V, self.n_d)
        self.weight_padded = jnp.pad(
            self.weight, ((0, n_V_pad - self.n_V), (0, n_d_pad - self.n_d)))
        self._lookup = jax.jit(
            functools.partial(embed_lookup, n_d=self.n_d, kv=kv))
        # fix_emb / padding_idx only affect gradients; no-op for forward.

    def __call__(self, input_):
        flat = input_.reshape(-1).astype(jnp.int32)
        out = self._lookup(self.weight_padded, flat)
        return out.reshape(input_.shape + (self.n_d,))


# --------------------------------------------------------------------------
# self-test
# --------------------------------------------------------------------------
if __name__ == "__main__":
    root = jax.random.PRNGKey(0)
    k_w, k_ids, k_w2, k_ids2 = jax.random.split(root, 4)

    # --- small vocab, single vocab tile ------------------------------------
    vocab = [f"w{i}" for i in range(10)] + ["<oov>", "<pad>"]
    word2id = {w: i for i, w in enumerate(vocab)}
    n_d = 128
    mod = Embed(n_d, word2id, key=k_w)

    batch, seq = 2, 8
    ids = jax.random.randint(k_ids, (batch, seq), 0, len(vocab), dtype=jnp.int32)
    out = jax.block_until_ready(mod(ids))

    ref = jnp.take(mod.weight, ids.reshape(-1), axis=0).reshape(batch, seq, n_d)
    assert out.shape == (batch, seq, n_d)
    assert jnp.allclose(out, ref, atol=1e-6, rtol=1e-6), \
        "Pallas gather mismatch vs jnp.take reference (small vocab)"

    # --- larger vocab: exercises the K-tiled accumulator (2 vocab tiles) ----
    big_vocab = [f"tok{i}" for i in range(2998)] + ["<oov>", "<pad>"]
    big_word2id = {w: i for i, w in enumerate(big_vocab)}
    n_d2 = 64
    mod2 = Embed(n_d2, big_word2id, key=k_w2)

    ids2 = jax.random.randint(k_ids2, (batch, seq), 0, len(big_vocab),
                              dtype=jnp.int32)
    out2 = jax.block_until_ready(mod2(ids2))
    ref2 = jnp.take(mod2.weight, ids2.reshape(-1), axis=0
                    ).reshape(batch, seq, n_d2)
    assert out2.shape == (batch, seq, n_d2)
    assert jnp.allclose(out2, ref2, atol=1e-6, rtol=1e-6), \
        "Pallas gather mismatch vs jnp.take reference (K-tiled vocab)"

    # --- bf16 table path (halved DMA bytes; one-hot is exact in bf16) -------
    mod16 = Embed(n_d, word2id, key=k_w, table_dtype=jnp.bfloat16)
    out16 = jax.block_until_ready(mod16(ids))
    ref16 = jnp.take(mod16.weight, ids.reshape(-1), axis=0
                     ).reshape(batch, seq, n_d)
    assert jnp.allclose(out16.astype(jnp.float32), ref16.astype(jnp.float32),
                        atol=1e-6, rtol=1e-6), \
        "Pallas gather mismatch vs jnp.take reference (bf16 table)"

    print("KERNEL_OK")
</pallas_src>

<mosaic_0001>
module attributes {stable_mosaic.version = 11 : i64} {
  func.func @_embed_onehot_kernel(%arg0: i32, %arg1: i32, %arg2: memref<16x1xi32, #tpu.memory_space<vmem>>, %arg3: memref<256x128xf32, #tpu.memory_space<vmem>>, %arg4: memref<16x128xf32, #tpu.memory_space<vmem>>, %arg5: memref<16x128xf32, #tpu.memory_space<vmem>>) attributes {dimension_semantics = [#tpu.dimension_semantics<parallel>, #tpu.dimension_semantics<arbitrary>], iteration_bounds = array<i64: 1, 1>, scalar_prefetch = 0 : i64, scratch_operands = 1 : i64, tpu.core_type = #tpu.core_type<tc>, window_params = [{transform_indices = @transform_0, window_bounds = array<i64: 16, 1>}, {transform_indices = @transform_1, window_bounds = array<i64: 256, 128>}, {transform_indices = @transform_2, window_bounds = array<i64: 16, 128>}]} {
    %c0_i32 = arith.constant 0 : i32
    %0 = arith.cmpi eq, %arg1, %c0_i32 : i32
    %1 = arith.extui %0 : i1 to i32
    %c0_i32_0 = arith.constant 0 : i32
    %2 = arith.cmpi ne, %1, %c0_i32_0 : i32
    scf.if %2 {
      %cst_10 = arith.constant 0.000000e+00 : f32
      %20 = vector.broadcast %cst_10 : f32 to vector<16x128xf32>
      %c0_11 = arith.constant 0 : index
      %c0_12 = arith.constant 0 : index
      %21 = vector.load %arg5[%c0_11, %c0_12] : memref<16x128xf32, #tpu.memory_space<vmem>>, vector<16x128xf32>
      tpu.vector_store %arg5[%c0_11, %c0_12], %20 {strides = array<i32>} : memref<16x128xf32, #tpu.memory_space<vmem>>, vector<16x128xf32>,
    } else {
    }
    %c0 = arith.constant 0 : index
    %c0_1 = arith.constant 0 : index
    %3 = vector.load %arg2[%c0, %c0_1] : memref<16x1xi32, #tpu.memory_space<vmem>>, vector<16x1xi32>
    %c256_i32 = arith.constant 256 : i32
    %4 = arith.muli %arg1, %c256_i32 : i32
    %5 = vector.broadcast %4 : i32 to vector<16x1xi32>
    %6 = arith.subi %3, %5 : vector<16x1xi32>
    %7 = tpu.iota {dimensions = array<i32: 1>} : vector<16x256xi32>
    %8 = vector.broadcast %6 : vector<16x1xi32> to vector<16x256xi32>
    %9 = arith.cmpi eq, %8, %7 : vector<16x256xi32>
    %c0_2 = arith.constant 0 : index
    %c0_3 = arith.constant 0 : index
    %10 = vector.load %arg5[%c0_2, %c0_3] : memref<16x128xf32, #tpu.memory_space<vmem>>, vector<16x128xf32>
    %11 = arith.extui %9 : vector<16x256xi1> to vector<16x256xi32>
    %12 = arith.sitofp %11 : vector<16x256xi32> to vector<16x256xf32>
    %c0_4 = arith.constant 0 : index
    %c0_5 = arith.constant 0 : index
    %13 = vector.load %arg3[%c0_4, %c0_5] : memref<256x128xf32, #tpu.memory_space<vmem>>, vector<256x128xf32>
    %cst = arith.constant dense<0.000000e+00> : vector<16x128xf32>
    %14 = tpu.matmul %12, %13, %cst {dimension_numbers = #tpu.dot_dimension_numbers<[1], [0], [0], [1], [0, 0, 1, 1], [], []>} : vector<16x256xf32>, vector<256x128xf32>, vector<16x128xf32> -> vector<16x128xf32>
    %15 = arith.addf %10, %14 : vector<16x128xf32>
    %c0_6 = arith.constant 0 : index
    %c0_7 = arith.constant 0 : index
    %16 = vector.load %arg5[%c0_6, %c0_7] : memref<16x128xf32, #tpu.memory_space<vmem>>, vector<16x128xf32>
    tpu.vector_store %arg5[%c0_6, %c0_7], %15 {strides = array<i32>} : memref<16x128xf32, #tpu.memory_space<vmem>>, vector<16x128xf32>,
    %c0_i32_8 = arith.constant 0 : i32
    %17 = arith.cmpi eq, %arg1, %c0_i32_8 : i32
    %18 = arith.extui %17 : i1 to i32
    %c0_i32_9 = arith.constant 0 : i32
    %19 = arith.cmpi ne, %18, %c0_i32_9 : i32
    scf.if %19 {
      %c0_10 = arith.constant 0 : index
      %c0_11 = arith.constant 0 : index
      %20 = vector.load %arg5[%c0_10, %c0_11] : memref<16x128xf32, #tpu.memory_space<vmem>>, vector<16x128xf32>
      %c0_12 = arith.constant 0 : index
      %c0_13 = arith.constant 0 : index
      %21 = vector.load %arg4[%c0_12, %c0_13] : memref<16x128xf32, #tpu.memory_space<vmem>>, vector<16x128xf32>
      tpu.vector_store %arg4[%c0_12, %c0_13], %20 {strides = array<i32>} : memref<16x128xf32, #tpu.memory_space<vmem>>, vector<16x128xf32>,
    } else {
    }
    return
  }
  func.func @transform_0(%arg0: i32, %arg1: i32) -> (i32, i32) {
    %c0_i32 = arith.constant 0 : i32
    %c0_i32_0 = arith.constant 0 : i32
    return %arg0, %c0_i32 : i32, i32
  }
  func.func @transform_1(%arg0: i32, %arg1: i32) -> (i32, i32) {
    %c0_i32 = arith.constant 0 : i32
    %c0_i32_0 = arith.constant 0 : i32
    return %arg1, %c0_i32 : i32, i32
  }
  func.func @transform_2(%arg0: i32, %arg1: i32) -> (i32, i32) {
    %c0_i32 = arith.constant 0 : i32
    %c0_i32_0 = arith.constant 0 : i32
    return %arg0, %c0_i32 : i32, i32
  }
}

</mosaic_0001>

<llo_original>
// kernel: embed_lookup.1
$region0: #{embed_lookup.1}
  #allocation0 [shape = 'u32[]', space=smem, size = 0x4, offset = 0x4, fixed_abs, tag = 'smem constant byte address 0x4 - core index']
  #allocation1 [shape = 'u32[144,128]{1,0:T(1,128)}', space=vmem, size = 0x12000, scoped, tag = 'internal scratch']
  #allocation2 [shape = 'f32[16,128]{1,0:T(8,128)}', space=vmem, size = 0x2000, scoped, tag = 'scratch operand']
  %s0 = inlined_call_operand.vmem [shape: s32[16,1], index: 0, kind: input, shape index: {}]
  %s1 = inlined_call_operand.hbm [shape: f32[256,128], index: 1, kind: input, shape index: {}]
  %s2 = inlined_call_operand.hbm [shape: f32[16,128], index: 2, kind: output, shape index: {}]
  %s3 = sld [smem:[#allocation0]]
  $region30: #{embed_lookup.1} parent=0
    _
  %s5 = ssub.s32 1, %s3
  %s6 = scalar_select 0, %s5, %s3
  $region1: #{embed_lookup.1} parent=0
    #allocation3 [shape = 'u8[131072]{0}', space=vmem, size = 0x20000, scoped, tag = 'input window, operand 1, single buffered']
    #allocation4 [shape = 's32[1]{0}', space=sflag, size = 0x4, scoped, tag = 'scoped memory for embed_lookup.1']
    #allocation5 [shape = 's32[1]{0}', space=sflag, size = 0x4, scoped, tag = 'scoped memory for embed_lookup.1']
    #allocation6 [shape = 'u8[8192]{0}', space=vmem, size = 0x2000, scoped, tag = 'output window, operand 0, single buffered']
    %7 = vsyncpa [#allocation4], 0
    %8 = vsyncpa [#allocation5], 0
    // Predicated region
    $region2: #{embed_lookup.1} parent=1 // pred_check
      _
    $region3: #{embed_lookup.1} parent=1 // pred_check_branch
      %10 = sbr.rel (0) target = $region5
    $region4: #{embed_lookup.1} parent=1 // pred_region
      _
    $region5: #{embed_lookup.1} parent=1 // pred_fallthru
      _
    // Predicated region
    $region6: #{embed_lookup.1} parent=1 // pred_check
      _
    $region7: #{embed_lookup.1} parent=1 // pred_check_branch
      %12 = sbr.rel (0) target = $region9
    $region8: #{embed_lookup.1} parent=1 // pred_region
      %s14 = ssub.s32 4096, 4096
      %15 = vsyncadd [#allocation4], %s14
      %s16 = sshll.u32 [#allocation3], 4
      %s17 = int_to_ptr.vmem [resolvable:$true] %s16
      %22 = dma.hbm_to_vmem [thread:$0]  %s1, 4096, %s17, [#allocation4], 128, 128, 8
    $region9: #{embed_lookup.1} parent=1 // pred_fallthru
      _
    // Predicated region
    $region10: #{embed_lookup.1} parent=1 // pred_check
      _
    $region11: #{embed_lookup.1} parent=1 // pred_check_branch
      %24 = sbr.rel (0) target = $region13
    $region12: #{embed_lookup.1} parent=1 // pred_region
      %25 = dma.done [#allocation4], 4096
    $region13: #{embed_lookup.1} parent=1 // pred_fallthru
      _
    %p26 = scmp.eq.s32.totalorder 0, 0
    // Predicated region
    $region14: #{embed_lookup.1} parent=1 // pred_check
      %p27 = pneg %p26
    $region15: #{embed_lookup.1} parent=1 // pred_check_branch
      %29 = sbr.rel (%p27) target = $region17
    $region16: #{embed_lookup.1} parent=1 // pred_region
      %30 = vst [vmem:[#allocation2] sm:$0xff] 0.0
      %31 = vst [vmem:[#allocation2 + $0x8] sm:$0xff] 0.0
    $region17: #{embed_lookup.1} parent=1 // pred_fallthru
      _
    %v32 = vld [vmem:[%s0] sm:$0xff]
    %v33 = vld [vmem:[%s0 + $0x8] sm:$0xff]
    %s34 = smul.u32 0, 256
    %v35 = vstv %s34
    %v36 = vsub.s32 %v32, %v35
    %v37 = vsub.s32 %v33, %v35
    %v38 = vlaneseq
    %v39 = vand.u32 %v38, 127
    %v40 = vadd.s32 %v39, 128
    %41 = vset.pattern.permute.xlu0 0
    %42 = vperm.xlu0 %41, %v36
    %v43 = vpop.permute.xlu0 %42
    %44 = vset.pattern.permute.xlu0 0
    %45 = vperm.xlu0 %44, %v37
    %v46 = vpop.permute.xlu0 %45
    %vm47 = vcmp.eq.s32.totalorder %v43, %v39
    %vm48 = vcmp.eq.s32.totalorder %v43, %v40
    %vm49 = vcmp.eq.s32.totalorder %v46, %v39
    %vm50 = vcmp.eq.s32.totalorder %v46, %v40
    %v51 = vld [vmem:[#allocation2] sm:$0xff]
    %v52 = vld [vmem:[#allocation2 + $0x8] sm:$0xff]
    %v53 = vsel %vm47, 1, 0
    %v54 = vsel %vm48, 1, 0
    %v55 = vsel %vm49, 1, 0
    %v56 = vsel %vm50, 1, 0
    %v57 = vcvt.s32.f32 %v53
    %v58 = vcvt.s32.f32 %v54
    %v59 = vcvt.s32.f32 %v55
    %v60 = vcvt.s32.f32 %v56
    %v61 = vld [vmem:[#allocation3] sm:$0xff]
    %v62 = vld [vmem:[#allocation3 + $0x8] sm:$0xff]
    %v63 = vld [vmem:[#allocation3 + $0x10] sm:$0xff]
    %v64 = vld [vmem:[#allocation3 + $0x18] sm:$0xff]
    %v65 = vld [vmem:[#allocation3 + $0x20] sm:$0xff]
    %v66 = vld [vmem:[#allocation3 + $0x28] sm:$0xff]
    %v67 = vld [vmem:[#allocation3 + $0x30] sm:$0xff]
    %v68 = vld [vmem:[#allocation3 + $0x38] sm:$0xff]
    %v69 = vld [vmem:[#allocation3 + $0x40] sm:$0xff]
    %v70 = vld [vmem:[#allocation3 + $0x48] sm:$0xff]
    %v71 = vld [vmem:[#allocation3 + $0x50] sm:$0xff]
    %v72 = vld [vmem:[#allocation3 + $0x58] sm:$0xff]
    %v73 = vld [vmem:[#allocation3 + $0x60] sm:$0xff]
    %v74 = vld [vmem:[#allocation3 + $0x68] sm:$0xff]
    %v75 = vld [vmem:[#allocation3 + $0x70] sm:$0xff]
    %v76 = vld [vmem:[#allocation3 + $0x78] sm:$0xff]
    %v77 = vld [vmem:[#allocation3 + $0x80] sm:$0xff]
    %v78 = vld [vmem:[#allocation3 + $0x88] sm:$0xff]
    %v79 = vld [vmem:[#allocation3 + $0x90] sm:$0xff]
    %v80 = vld [vmem:[#allocation3 + $0x98] sm:$0xff]
    %v81 = vld [vmem:[#allocation3 + $0xa0] sm:$0xff]
    %v82 = vld [vmem:[#allocation3 + $0xa8] sm:$0xff]
    %v83 = vld [vmem:[#allocation3 + $0xb0] sm:$0xff]
    %v84 = vld [vmem:[#allocation3 + $0xb8] sm:$0xff]
    %v85 = vld [vmem:[#allocation3 + $0xc0] sm:$0xff]
    %v86 = vld [vmem:[#allocation3 + $0xc8] sm:$0xff]
    %v87 = vld [vmem:[#allocation3 + $0xd0] sm:$0xff]
    %v88 = vld [vmem:[#allocation3 + $0xd8] sm:$0xff]
    %v89 = vld [vmem:[#allocation3 + $0xe0] sm:$0xff]
    %v90 = vld [vmem:[#allocation3 + $0xe8] sm:$0xff]
    %v91 = vld [vmem:[#allocation3 + $0xf0] sm:$0xff]
    %v92 = vld [vmem:[#allocation3 + $0xf8] sm:$0xff]
    %93 = vmatprep.subr.mxu0 0.0
    %94 = vmatpush1.msra.mxu0 %v61
    %95 = vmatprep.subr.mxu0 0.0
    %96 = vmatpush1.msra.mxu0 %v62
    %97 = vmatprep.subr.mxu0 0.0
    %98 = vmatpush1.msra.mxu0 %v63
    %99 = vmatprep.subr.mxu0 0.0
    %100 = vmatpush1.msra.mxu0 %v64
    %101 = vmatprep.subr.mxu0 0.0
    %102 = vmatpush1.msra.mxu0 %v65
    %103 = vmatprep.subr.mxu0 0.0
    %104 = vmatpush1.msra.mxu0 %v66
    %105 = vmatprep.subr.mxu0 0.0
    %106 = vmatpush1.msra.mxu0 %v67
    %107 = vmatprep.subr.mxu0 0.0
    %108 = vmatpush1.msra.mxu0 %v68
    %109 = vmatprep.subr.mxu0 0.0
    %110 = vmatpush1.msra.mxu0 %v69
    %111 = vmatprep.subr.mxu0 0.0
    %112 = vmatpush1.msra.mxu0 %v70
    %113 = vmatprep.subr.mxu0 0.0
    %114 = vmatpush1.msra.mxu0 %v71
    %115 = vmatprep.subr.mxu0 0.0
    %116 = vmatpush1.msra.mxu0 %v72
    %117 = vmatprep.subr.mxu0 0.0
    %118 = vmatpush1.msra.mxu0 %v73
    %119 = vmatprep.subr.mxu0 0.0
    %120 = vmatpush1.msra.mxu0 %v74
    %121 = vmatprep.subr.mxu0 0.0
    %122 = vmatpush1.msra.mxu0 %v75
    %123 = vmatprep.subr.mxu0 0.0
    %124 = vmatpush1.msra.mxu0 %v76
    %125 = vmatprep.subr.mxu0 0.0
    %126 = vmatpush1.msra.mxu0 %v77
    %127 = vmatprep.subr.mxu0 0.0
    %128 = vmatpush1.msra.mxu0 %v78
    %129 = vmatprep.subr.mxu0 0.0
    %130 = vmatpush1.msra.mxu0 %v79
    %131 = vmatprep.subr.mxu0 0.0
    %132 = vmatpush1.msra.mxu0 %v80
    %133 = vmatprep.subr.mxu0 0.0
    %134 = vmatpush1.msra.mxu0 %v81
    %135 = vmatprep.subr.mxu0 0.0
    %136 = vmatpush1.msra.mxu0 %v82
    %137 = vmatprep.subr.mxu0 0.0
    %138 = vmatpush1.msra.mxu0 %v83
    %139 = vmatprep.subr.mxu0 0.0
    %140 = vmatpush1.msra.mxu0 %v84
    %141 = vmatprep.subr.mxu0 0.0
    %142 = vmatpush1.msra.mxu0 %v85
    %143 = vmatprep.subr.mxu0 0.0
    %144 = vmatpush1.msra.mxu0 %v86
    %145 = vmatprep.subr.mxu0 0.0
    %146 = vmatpush1.msra.mxu0 %v87
    %147 = vmatprep.subr.mxu0 0.0
    %148 = vmatpush1.msra.mxu0 %v88
    %149 = vmatprep.subr.mxu0 0.0
    %150 = vmatpush1.msra.mxu0 %v89
    %151 = vmatprep.subr.mxu0 0.0
    %152 = vmatpush1.msra.mxu0 %v90
    %153 = vmatprep.subr.mxu0 0.0
    %154 = vmatpush1.msra.mxu0 %v91
    %155 = vmatprep.subr.mxu0 0.0
    %156 = vmatpush1.msra.mxu0 %v92
    %157 = vmatprep.mubr.f32.mxu0 %v58
    %158 = vmatmul.mubr.f32.gmra.mrb[0].mxu0 %v57
    %v159 = vpop.f32.mrb[0].mxu0
    %v160 = vadd.f32 0.0, %v159
    %v161 = vpop.f32.mrb[0].mxu0
    %162 = vmatprep.mubr.f32.mxu0 %v60
    %163 = vmatmul.mubr.f32.gmra.mrb[0].mxu0 %v59
    %v164 = vpop.f32.mrb[0].mxu0
    %v165 = vadd.f32 0.0, %v164
    %v166 = vpop.f32.mrb[0].mxu0
    %167 = vdwg.mxu0
    %v168 = vadd.f32 %v51, %v160
    %v169 = vadd.f32 %v52, %v165
    %170 = vst [vmem:[#allocation2] sm:$0xff] %v168
    %171 = vst [vmem:[#allocation2 + $0x8] sm:$0xff] %v169
    // Predicated region
    $region18: #{embed_lookup.1} parent=1 // pred_check
      %p172 = pneg %p26
    $region19: #{embed_lookup.1} parent=1 // pred_check_branch
      %174 = sbr.rel (%p172) target = $region21
    $region20: #{embed_lookup.1} parent=1 // pred_region
      %v175 = vld [vmem:[#allocation2] sm:$0xff]
      %v176 = vld [vmem:[#allocation2 + $0x8] sm:$0xff]
      %177 = vst [vmem:[#allocation6] sm:$0xff] %v175
      %178 = vst [vmem:[#allocation6 + $0x8] sm:$0xff] %v176
    $region21: #{embed_lookup.1} parent=1 // pred_fallthru
      _
    // Predicated region
    $region22: #{embed_lookup.1} parent=1 // pred_check
      _
    $region23: #{embed_lookup.1} parent=1 // pred_check_branch
      %180 = sbr.rel (0) target = $region25
    $region24: #{embed_lookup.1} parent=1 // pred_region
      %s182 = ssub.s32 256, 256
      %183 = vsyncadd [#allocation5], %s182
      %s184 = sshll.u32 [#allocation6], 4
      %s185 = int_to_ptr.vmem [resolvable:$true] %s184
      %190 = dma.vmem_to_hbm [thread:$0]  %s185, 256, %s2, [#allocation5], 128, 128, 8
    $region25: #{embed_lookup.1} parent=1 // pred_fallthru
      _
    // Predicated region
    $region26: #{embed_lookup.1} parent=1 // pred_check
      _
    $region27: #{embed_lookup.1} parent=1 // pred_check_branch
      %192 = sbr.rel (0) target = $region29
    $region28: #{embed_lookup.1} parent=1 // pred_region
      %193 = dma.done [#allocation5], 256
    $region29: #{embed_lookup.1} parent=1 // pred_fallthru
      _
    %194 = vsyncpa [#allocation4], 1
    %195 = vsyncpa [#allocation5], 1

</llo_original>
